<compile_context>
chip_gen: v7x
topology: tpu7x:2x2x1
jax: 0.10.0
libtpu: 0.0.40
codegen_flags: <defaults>
</compile_context>

<pallas_src>
import math
import functools

import jax
import jax.numpy as jnp
from jax.experimental import pallas as pl
from jax.experimental.pallas import tpu as pltpu


def _round_up(x, m):
    return ((x + m - 1) // m) * m


# ----------------------------------------------------------------------------
# Kernel 1: H = x @ W + b   (row-tiled, computed exactly once)
# ----------------------------------------------------------------------------
def _feature_kernel(x_ref, w_ref, b_ref, o_ref):
    h = jnp.dot(x_ref[...], w_ref[...], preferred_element_type=jnp.float32)
    h = h + b_ref[...].astype(jnp.float32)      # (1, OUT_P) broadcasts over rows
    o_ref[...] = h.astype(o_ref.dtype)


def _feature_transform(x_p, w_p, b_p, tile):
    n_pad, in_ft = x_p.shape
    out_p = w_p.shape[1]
    cost = pl.CostEstimate(
        flops=2 * n_pad * in_ft * out_p,
        transcendentals=0,
        bytes_accessed=4 * (n_pad * in_ft + in_ft * out_p + out_p + n_pad * out_p),
    )
    return pl.pallas_call(
        _feature_kernel,
        out_shape=jax.ShapeDtypeStruct((n_pad, out_p), x_p.dtype),
        grid_spec=pltpu.PrefetchScalarGridSpec(
            num_scalar_prefetch=0,
            grid=(n_pad // tile,),
            in_specs=[
                pl.BlockSpec((tile, in_ft), lambda i: (i, 0)),   # x row tile
                pl.BlockSpec((in_ft, out_p), lambda i: (0, 0)),  # W (resident)
                pl.BlockSpec((1, out_p), lambda i: (0, 0)),      # bias (resident)
            ],
            out_specs=pl.BlockSpec((tile, out_p), lambda i: (i, 0)),
        ),
        compiler_params=pltpu.CompilerParams(
            dimension_semantics=("parallel",),
            vmem_limit_bytes=64 << 20,
        ),
        cost_estimate=cost,
    )(x_p, w_p, b_p)


# ----------------------------------------------------------------------------
# Kernel 2: Y = G @ H   (row-parallel x k-reduction grid, f32 accumulator)
# ----------------------------------------------------------------------------
def _aggregate_kernel(g_ref, h_ref, o_ref, acc_ref):
    k = pl.program_id(1)

    @pl.when(k == 0)
    def _():
        acc_ref[...] = jnp.zeros_like(acc_ref)

    acc_ref[...] += jnp.dot(g_ref[...], h_ref[...],
                            preferred_element_type=jnp.float32)

    @pl.when(k == pl.num_programs(1) - 1)
    def _():
        o_ref[...] = acc_ref[...].astype(o_ref.dtype)


def _aggregate(g_p, h_p, tile):
    n_pad = g_p.shape[0]
    out_p = h_p.shape[1]
    n_tiles = n_pad // tile
    cost = pl.CostEstimate(
        flops=2 * n_pad * n_pad * out_p,
        transcendentals=0,
        bytes_accessed=4 * (n_pad * n_pad                 # G read once
                            + n_tiles * n_pad * out_p     # H read per row tile
                            + n_pad * out_p),             # Y written once
    )
    return pl.pallas_call(
        _aggregate_kernel,
        out_shape=jax.ShapeDtypeStruct((n_pad, out_p), h_p.dtype),
        grid_spec=pltpu.PrefetchScalarGridSpec(
            num_scalar_prefetch=0,
            grid=(n_tiles, n_tiles),                       # (rows, k) — reduction last
            in_specs=[
                pl.BlockSpec((tile, tile), lambda i, k: (i, k)),   # G tile
                pl.BlockSpec((tile, out_p), lambda i, k: (k, 0)),  # H tile
            ],
            out_specs=pl.BlockSpec((tile, out_p), lambda i, k: (i, 0)),
            scratch_shapes=[pltpu.VMEM((tile, out_p), jnp.float32)],
        ),
        compiler_params=pltpu.CompilerParams(
            dimension_semantics=("parallel", "arbitrary"),
            vmem_limit_bytes=64 << 20,
        ),
        cost_estimate=cost,
    )(g_p, h_p)


# ----------------------------------------------------------------------------
# Public wrapper: y = G @ (x @ W + b)
# ----------------------------------------------------------------------------
@functools.partial(jax.jit, static_argnames=("tile",))
def hgnn_conv(x, weight, bias, G, *, tile=256):
    """y = G @ (x @ weight + bias).
    x:(N,in_ft) weight:(in_ft,out_ft) bias:(out_ft,)|None G:(N,N) -> (N,out_ft)."""
    N, in_ft = x.shape
    out_ft = weight.shape[1]
    dtype = x.dtype

    if bias is None:
        bias = jnp.zeros((out_ft,), dtype)

    out_p = _round_up(out_ft, 128)                 # lane-dense output / MXU free dim
    tile_eff = min(tile, _round_up(N, 128))        # don't over-pad tiny graphs
    n_pad = _round_up(N, tile_eff)                 # tile-aligned node axis

    x_p = jnp.pad(x, ((0, n_pad - N), (0, 0)))
    w_p = jnp.pad(weight, ((0, 0), (0, out_p - out_ft)))
    b_p = jnp.pad(bias, (0, out_p - out_ft)).reshape(1, out_p).astype(dtype)
    # Zero columns of G kill the bias-valued padded rows of H -> exact numerics.
    g_p = jnp.pad(G, ((0, n_pad - N), (0, n_pad - N)))

    h_p = _feature_transform(x_p, w_p, b_p, tile_eff)   # (n_pad, out_p)
    y_p = _aggregate(g_p, h_p, tile_eff)                # (n_pad, out_p)
    return y_p[:N, :out_ft]


def init_params(key, in_ft, out_ft, dtype=jnp.float32):
    """Mirror HGNN_conv.reset_parameters: U(-stdv, stdv), stdv = 1/sqrt(out_ft)."""
    stdv = 1.0 / math.sqrt(out_ft)
    kw, kb = jax.random.split(key)
    weight = jax.random.uniform(kw, (in_ft, out_ft), dtype,
                                minval=-stdv, maxval=stdv)
    bias = jax.random.uniform(kb, (out_ft,), dtype,
                              minval=-stdv, maxval=stdv)
    return weight, bias


if __name__ == "__main__":
    key = jax.random.PRNGKey(0)
    k_x, k_g, k_p = jax.random.split(key, 3)

    # Small, deliberately "ragged" shapes to exercise the padding paths.
    N, in_ft, out_ft = 200, 48, 36
    x = jax.random.normal(k_x, (N, in_ft), jnp.float32)
    G = jax.random.normal(k_g, (N, N), jnp.float32)
    weight, bias = init_params(k_p, in_ft, out_ft)

    y = hgnn_conv(x, weight, bias, G, tile=128)
    jax.block_until_ready(y)

    # Pure-JAX reference check of the two fused kernels.
    y_ref = G @ (x @ weight + bias)
    assert y.shape == (N, out_ft)
    assert jnp.allclose(y, y_ref, atol=1e-3, rtol=1e-4), (
        float(jnp.max(jnp.abs(y - y_ref))))

    print("KERNEL_OK")
</pallas_src>

<mosaic_0001>
module attributes {stable_mosaic.version = 11 : i64} {
  func.func @_aggregate_kernel(%arg0: i32, %arg1: i32, %arg2: memref<128x128xf32, #tpu.memory_space<vmem>>, %arg3: memref<128x128xf32, #tpu.memory_space<vmem>>, %arg4: memref<128x128xf32, #tpu.memory_space<vmem>>, %arg5: memref<128x128xf32, #tpu.memory_space<vmem>>) attributes {dimension_semantics = [#tpu.dimension_semantics<parallel>, #tpu.dimension_semantics<arbitrary>], iteration_bounds = array<i64: 2, 2>, scalar_prefetch = 0 : i64, scratch_operands = 1 : i64, tpu.core_type = #tpu.core_type<tc>, window_params = [{transform_indices = @transform_0, window_bounds = array<i64: 128, 128>}, {transform_indices = @transform_1, window_bounds = array<i64: 128, 128>}, {transform_indices = @transform_2, window_bounds = array<i64: 128, 128>}]} {
    %c0_i32 = arith.constant 0 : i32
    %0 = arith.cmpi eq, %arg1, %c0_i32 : i32
    %1 = arith.extui %0 : i1 to i32
    %c0_i32_0 = arith.constant 0 : i32
    %2 = arith.cmpi ne, %1, %c0_i32_0 : i32
    scf.if %2 {
      %cst_9 = arith.constant 0.000000e+00 : f32
      %12 = vector.broadcast %cst_9 : f32 to vector<128x128xf32>
      %c0_10 = arith.constant 0 : index
      %c0_11 = arith.constant 0 : index
      %13 = vector.load %arg5[%c0_10, %c0_11] : memref<128x128xf32, #tpu.memory_space<vmem>>, vector<128x128xf32>
      tpu.vector_store %arg5[%c0_10, %c0_11], %12 {strides = array<i32>} : memref<128x128xf32, #tpu.memory_space<vmem>>, vector<128x128xf32>,
    } else {
    }
    %c0 = arith.constant 0 : index
    %c0_1 = arith.constant 0 : index
    %3 = vector.load %arg5[%c0, %c0_1] : memref<128x128xf32, #tpu.memory_space<vmem>>, vector<128x128xf32>
    %c0_2 = arith.constant 0 : index
    %c0_3 = arith.constant 0 : index
    %4 = vector.load %arg2[%c0_2, %c0_3] : memref<128x128xf32, #tpu.memory_space<vmem>>, vector<128x128xf32>
    %c0_4 = arith.constant 0 : index
    %c0_5 = arith.constant 0 : index
    %5 = vector.load %arg3[%c0_4, %c0_5] : memref<128x128xf32, #tpu.memory_space<vmem>>, vector<128x128xf32>
    %cst = arith.constant dense<0.000000e+00> : vector<128x128xf32>
    %6 = tpu.matmul %4, %5, %cst {dimension_numbers = #tpu.dot_dimension_numbers<[1], [0], [0], [1], [0, 0, 1, 1], [], []>} : vector<128x128xf32>, vector<128x128xf32>, vector<128x128xf32> -> vector<128x128xf32>
    %7 = arith.addf %3, %6 : vector<128x128xf32>
    %c0_6 = arith.constant 0 : index
    %c0_7 = arith.constant 0 : index
    %8 = vector.load %arg5[%c0_6, %c0_7] : memref<128x128xf32, #tpu.memory_space<vmem>>, vector<128x128xf32>
    tpu.vector_store %arg5[%c0_6, %c0_7], %7 {strides = array<i32>} : memref<128x128xf32, #tpu.memory_space<vmem>>, vector<128x128xf32>,
    %c1_i32 = arith.constant 1 : i32
    %9 = arith.cmpi eq, %arg1, %c1_i32 : i32
    %10 = arith.extui %9 : i1 to i32
    %c0_i32_8 = arith.constant 0 : i32
    %11 = arith.cmpi ne, %10, %c0_i32_8 : i32
    scf.if %11 {
      %c0_9 = arith.constant 0 : index
      %c0_10 = arith.constant 0 : index
      %12 = vector.load %arg5[%c0_9, %c0_10] : memref<128x128xf32, #tpu.memory_space<vmem>>, vector<128x128xf32>
      %c0_11 = arith.constant 0 : index
      %c0_12 = arith.constant 0 : index
      %13 = vector.load %arg4[%c0_11, %c0_12] : memref<128x128xf32, #tpu.memory_space<vmem>>, vector<128x128xf32>
      tpu.vector_store %arg4[%c0_11, %c0_12], %12 {strides = array<i32>} : memref<128x128xf32, #tpu.memory_space<vmem>>, vector<128x128xf32>,
    } else {
    }
    return
  }
  func.func @transform_0(%arg0: i32, %arg1: i32) -> (i32, i32) {
    %c0_i32 = arith.constant 0 : i32
    return %arg0, %arg1 : i32, i32
  }
  func.func @transform_1(%arg0: i32, %arg1: i32) -> (i32, i32) {
    %c0_i32 = arith.constant 0 : i32
    %c0_i32_0 = arith.constant 0 : i32
    return %arg1, %c0_i32 : i32, i32
  }
  func.func @transform_2(%arg0: i32, %arg1: i32) -> (i32, i32) {
    %c0_i32 = arith.constant 0 : i32
    %c0_i32_0 = arith.constant 0 : i32
    return %arg0, %c0_i32 : i32, i32
  }
}

module attributes {stable_mosaic.version = 11 : i64} {
  func.func @_feature_kernel(%arg0: i32, %arg1: memref<128x48xf32, #tpu.memory_space<vmem>>, %arg2: memref<48x128xf32, #tpu.memory_space<vmem>>, %arg3: memref<1x128xf32, #tpu.memory_space<vmem>>, %arg4: memref<128x128xf32, #tpu.memory_space<vmem>>) attributes {dimension_semantics = [#tpu.dimension_semantics<parallel>], iteration_bounds = array<i64: 2>, scalar_prefetch = 0 : i64, scratch_operands = 0 : i64, tpu.core_type = #tpu.core_type<tc>, window_params = [{transform_indices = @transform_0, window_bounds = array<i64: 128, 48>}, {pipeline_mode = #tpu.pipeline_mode<synchronous>, transform_indices = @transform_1, window_bounds = array<i64: 48, 128>}, {pipeline_mode = #tpu.pipeline_mode<synchronous>, transform_indices = @transform_2, window_bounds = array<i64: 1, 128>}, {transform_indices = @transform_3, window_bounds = array<i64: 128, 128>}]} {
    %c0 = arith.constant 0 : index
    %c0_0 = arith.constant 0 : index
    %0 = vector.load %arg1[%c0, %c0_0] : memref<128x48xf32, #tpu.memory_space<vmem>>, vector<128x48xf32>
    %c0_1 = arith.constant 0 : index
    %c0_2 = arith.constant 0 : index
    %1 = vector.load %arg2[%c0_1, %c0_2] : memref<48x128xf32, #tpu.memory_space<vmem>>, vector<48x128xf32>
    %cst = arith.constant dense<0.000000e+00> : vector<128x128xf32>
    %2 = tpu.matmul %0, %1, %cst {dimension_numbers = #tpu.dot_dimension_numbers<[1], [0], [0], [1], [0, 0, 1, 1], [], []>} : vector<128x48xf32>, vector<48x128xf32>, vector<128x128xf32> -> vector<128x128xf32>
    %c0_3 = arith.constant 0 : index
    %c0_4 = arith.constant 0 : index
    %3 = vector.load %arg3[%c0_3, %c0_4] : memref<1x128xf32, #tpu.memory_space<vmem>>, vector<1x128xf32>
    %4 = vector.broadcast %3 : vector<1x128xf32> to vector<128x128xf32>
    %5 = arith.addf %2, %4 : vector<128x128xf32>
    %c0_5 = arith.constant 0 : index
    %c0_6 = arith.constant 0 : index
    %6 = vector.load %arg4[%c0_5, %c0_6] : memref<128x128xf32, #tpu.memory_space<vmem>>, vector<128x128xf32>
    tpu.vector_store %arg4[%c0_5, %c0_6], %5 {strides = array<i32>} : memref<128x128xf32, #tpu.memory_space<vmem>>, vector<128x128xf32>,
    return
  }
  func.func @transform_0(%arg0: i32) -> (i32, i32) {
    %c0_i32 = arith.constant 0 : i32
    %c0_i32_0 = arith.constant 0 : i32
    return %arg0, %c0_i32 : i32, i32
  }
  func.func @transform_1(%arg0: i32) -> (i32, i32) {
    %c0_i32 = arith.constant 0 : i32
    %c0_i32_0 = arith.constant 0 : i32
    %c0_i32_1 = arith.constant 0 : i32
    return %c0_i32, %c0_i32_0 : i32, i32
  }
  func.func @transform_2(%arg0: i32) -> (i32, i32) {
    %c0_i32 = arith.constant 0 : i32
    %c0_i32_0 = arith.constant 0 : i32
    %c0_i32_1 = arith.constant 0 : i32
    return %c0_i32, %c0_i32_0 : i32, i32
  }
  func.func @transform_3(%arg0: i32) -> (i32, i32) {
    %c0_i32 = arith.constant 0 : i32
    %c0_i32_0 = arith.constant 0 : i32
    return %arg0, %c0_i32 : i32, i32
  }
}

</mosaic_0001>

<llo_original>
// kernel: hgnn_conv.2
$region0: #{hgnn_conv.2}
  #allocation0 [shape = 'u32[]', space=smem, size = 0x4, offset = 0x4, fixed_abs, tag = 'smem constant byte address 0x4 - core index']
  #allocation1 [shape = 'u32[144,128]{1,0:T(1,128)}', space=vmem, size = 0x12000, scoped, tag = 'internal scratch']
  %s0 = inlined_call_operand.hbm [shape: f32[256,48], index: 0, kind: input, shape index: {}]
  %s1 = inlined_call_operand.hbm [shape: f32[48,128], index: 1, kind: input, shape index: {}]
  %s2 = inlined_call_operand.hbm [shape: f32[1,128], index: 2, kind: input, shape index: {}]
  %s3 = inlined_call_operand.hbm [shape: f32[256,128], index: 3, kind: output, shape index: {}]
  %s4 = sld [smem:[#allocation0]]
  $region57: #{hgnn_conv.2} parent=0
    _
  %s6 = ssub.s32 1, %s4
  %s7 = scalar_select 0, %s6, %s4
  $region1: #{hgnn_conv.2} parent=0
    #allocation2 [shape = 'u8[131072]{0}', space=vmem, size = 0x20000, scoped, tag = 'input window, operand 0']
    #allocation3 [shape = 's32[2]{0}', space=sflag, size = 0x8, scoped, tag = 'scoped memory for hgnn_conv.2']
    #allocation4 [shape = 's32[2]{0}', space=sflag, size = 0x8, scoped, tag = 'scoped memory for hgnn_conv.2']
    #allocation5 [shape = 'u8[24576]{0}', space=vmem, size = 0x6000, scoped, tag = 'input window, operand 1, single buffered']
    #allocation6 [shape = 's32[1]{0}', space=sflag, size = 0x4, scoped, tag = 'scoped memory for hgnn_conv.2']
    #allocation7 [shape = 'u8[512]{0}', space=vmem, size = 0x400, scoped, tag = 'input window, operand 2, single buffered']
    #allocation8 [shape = 'u8[131072]{0}', space=vmem, size = 0x20000, scoped, tag = 'output window, operand 0']
    %8 = vsyncpa [#allocation3], 0
    %s9 = scalar_lea.sflag [#allocation3], 1
    %10 = vsyncpa %s9, 0
    %11 = vsyncpa [#allocation6], 0
    %12 = vsyncpa [#allocation4], 0
    %s13 = scalar_lea.sflag [#allocation4], 1
    %14 = vsyncpa %s13, 0
    loop: start=0, step=1, limit=4
    $region2: #{hgnn_conv.2} parent=1 // loop_pre_header
      _
    $region3: #{hgnn_conv.2} parent=1 // loop_header
      %s16 = sphi 0, %s20
      %p17 = scmp.ge.s32.totalorder %s16, 4
      %s26 = sphi 0, %s28
      %s29 = sphi 0, %s26
      %s30 = sphi 0, %s29
      %s46 = sphi 0, %s30
      %s50 = sphi 0, %s50
      %s52 = sphi 0, %s50
      %s53 = sphi 0, %s52
      %s67 = sphi 0, %s53
      %s71 = sphi 0, %s71
      %s73 = sphi 0, %s71
      %s74 = sphi 0, %s73
      %s88 = sphi 0, %s74
      %s94 = sphi 0, %s96
      %s97 = sphi 0, %s94
      %s98 = sphi 0, %s97
      %s114 = sphi 0, %s98
    $region4: #{hgnn_conv.2} parent=1 // loop_header_branch
      %19 = sbr.rel (%p17) target = $region8
    $region5: #{hgnn_conv.2} parent=1 // loop_body
      %s21 = ssub.s32 %s16, 1
      %s22 = ssub.s32 %s16, 2
      %s23 = sadd.s32 %s16, 1
      %s24 = ssub.s32 %s16, %s23
      %p25 = scmp.eq.s32.totalorder %s24, 0
      %s27 = sadd.s32 %s26, 1
      %s28 = scalar_select %p25, %s26, %s27
      %p31 = pneg %p25
      %p32 = scmp.eq.s32.totalorder %s16, 1
      %p33 = por %p31, %p32
      %p34 = scmp.ne.s32.totalorder %s26, %s29
      %p35 = scmp.eq.s32.totalorder %s16, 0
      %p36 = por %p34, %p35
      %p37 = scmp.ne.s32.totalorder %s26, %s29
      %p38 = scmp.eq.s32.totalorder %s21, 1
      %p39 = por %p37, %p38
      %p40 = scmp.ne.s32.totalorder %s29, %s30
      %p41 = scmp.eq.s32.totalorder %s21, 0
      %p42 = por %p40, %p41
      %p43 = scmp.ne.s32.totalorder %s29, %s30
      %p44 = scmp.eq.s32.totalorder %s22, 1
      %p45 = por %p43, %p44
      %p47 = scmp.ne.s32.totalorder %s30, %s46
      %p48 = scmp.eq.s32.totalorder %s22, 0
      %p49 = por %p47, %p48
      %s51 = sadd.s32 %s50, 1
      %p54 = scmp.eq.s32.totalorder %s16, 1
      %p55 = scmp.ne.s32.totalorder %s50, %s52
      %p56 = scmp.eq.s32.totalorder %s16, 0
      %p57 = por %p55, %p56
      %p58 = scmp.ne.s32.totalorder %s50, %s52
      %p59 = scmp.eq.s32.totalorder %s21, 1
      %p60 = por %p58, %p59
      %p61 = scmp.ne.s32.totalorder %s52, %s53
      %p62 = scmp.eq.s32.totalorder %s21, 0
      %p63 = por %p61, %p62
      %p64 = scmp.ne.s32.totalorder %s52, %s53
      %p65 = scmp.eq.s32.totalorder %s22, 1
      %p66 = por %p64, %p65
      %p68 = scmp.ne.s32.totalorder %s53, %s67
      %p69 = scmp.eq.s32.totalorder %s22, 0
      %p70 = por %p68, %p69
      %s72 = sadd.s32 %s71, 1
      %p75 = scmp.eq.s32.totalorder %s16, 1
      %p76 = scmp.ne.s32.totalorder %s71, %s73
      %p77 = scmp.eq.s32.totalorder %s16, 0
      %p78 = por %p76, %p77
      %p79 = scmp.ne.s32.totalorder %s71, %s73
      %p80 = scmp.eq.s32.totalorder %s21, 1
      %p81 = por %p79, %p80
      %p82 = scmp.ne.s32.totalorder %s73, %s74
      %p83 = scmp.eq.s32.totalorder %s21, 0
      %p84 = por %p82, %p83
      %p85 = scmp.ne.s32.totalorder %s73, %s74
      %p86 = scmp.eq.s32.totalorder %s22, 1
      %p87 = por %p85, %p86
      %p89 = scmp.ne.s32.totalorder %s74, %s88
      %p90 = scmp.eq.s32.totalorder %s22, 0
      %p91 = por %p89, %p90
      %s92 = ssub.s32 %s16, %s23
      %p93 = scmp.eq.s32.totalorder %s92, 0
      %s95 = sadd.s32 %s94, 1
      %s96 = scalar_select %p93, %s94, %s95
      %p99 = pneg %p93
      %p100 = scmp.eq.s32.totalorder %s16, 1
      %p101 = por %p99, %p100
      %p102 = scmp.ne.s32.totalorder %s94, %s97
      %p103 = scmp.eq.s32.totalorder %s16, 0
      %p104 = por %p102, %p103
      %p105 = scmp.ne.s32.totalorder %s94, %s97
      %p106 = scmp.eq.s32.totalorder %s21, 1
      %p107 = por %p105, %p106
      %p108 = scmp.ne.s32.totalorder %s97, %s98
      %p109 = scmp.eq.s32.totalorder %s21, 0
      %p110 = por %p108, %p109
      %p111 = scmp.ne.s32.totalorder %s97, %s98
      %p112 = scmp.eq.s32.totalorder %s22, 1
      %p113 = por %p111, %p112
      %p115 = scmp.ne.s32.totalorder %s98, %s114
      %p116 = scmp.eq.s32.totalorder %s22, 0
      %p117 = por %p115, %p116
      %p118 = scmp.le.s32.totalorder 1, %s16
      %p119 = scmp.lt.s32.totalorder %s16, 3
      %p120 = pnand %p118, %p119
      %p121 = pneg %p120
      // Predicated region
      $region9: #{hgnn_conv.2} parent=5 // pred_check
        _
      $region10: #{hgnn_conv.2} parent=5 // pred_check_branch
        %123 = sbr.rel (%p120) target = $region12
      $region11: #{hgnn_conv.2} parent=5 // pred_region
        %s124 = ssub.s32 %s16, 1
        // Predicated region
        $region13: #{hgnn_conv.2} parent=11 // pred_check
          %p125 = pneg %p63
        $region14: #{hgnn_conv.2} parent=11 // pred_check_branch
          %127 = sbr.rel (%p125) target = $region16
        $region15: #{hgnn_conv.2} parent=11 // pred_region
          %s129 = ssub.s32 768, 768
          %130 = vsyncadd [#allocation6], %s129
          %s131 = sshll.u32 [#allocation5], 4
          %s132 = int_to_ptr.vmem [resolvable:$true] %s131
          %137 = dma.hbm_to_vmem [thread:$0]  %s1, 768, %s132, [#allocation6], 128, 128, 8
        $region16: #{hgnn_conv.2} parent=11 // pred_fallthru
          _
        // Predicated region
        $region17: #{hgnn_conv.2} parent=11 // pred_check
          %p138 = pneg %p84
        $region18: #{hgnn_conv.2} parent=11 // pred_check_branch
          %140 = sbr.rel (%p138) target = $region20
        $region19: #{hgnn_conv.2} parent=11 // pred_region
          %s142 = ssub.s32 16, 16
          %143 = vsyncadd [#allocation6], %s142
          %s145 = sshll.u32 [#allocation7], 4
          %s146 = int_to_ptr.vmem [resolvable:$true] %s145
          %148 = dma.hbm_to_vmem [thread:$0]  %s2, 16, %s146, [#allocation6]
        $region20: #{hgnn_conv.2} parent=11 // pred_fallthru
          _
      $region12: #{hgnn_conv.2} parent=5 // pred_fallthru
        _
      %p149 = scmp.lt.s32.totalorder %s16, 2
      // Predicated region
      $region21: #{hgnn_conv.2} parent=5 // pred_check
        %p150 = pneg %p149
      $region22: #{hgnn_conv.2} parent=5 // pred_check_branch
        %152 = sbr.rel (%p150) target = $region24
      $region23: #{hgnn_conv.2} parent=5 // pred_region
        // Predicated region
        $region25: #{hgnn_conv.2} parent=23 // pred_check
          %p153 = pneg %p36
        $region26: #{hgnn_conv.2} parent=23 // pred_check_branch
          %155 = sbr.rel (%p153) target = $region28
        $region27: #{hgnn_conv.2} parent=23 // pred_region
          %s156 = sand.u32 %s26, 1
          %s157 = scalar_lea.sflag [#allocation3], %s156
          %s158 = sand.u32 %s26, 1
          %s159 = smul.addr %s158, 128
          %s160 = scalar_lea.vmem [#allocation2], %s159
          %s161 = smul.u32 16, %s16
          %s163 = ssub.s32 2048, 2048
          %164 = vsyncadd %s157, %s163
          %s165 = smul.addr %s161, 128
          %s166 = scalar_lea.hbm %s0, %s165
          %s167 = sshll.u32 %s160, 4
          %s168 = int_to_ptr.vmem [resolvable:$true] %s167
          %173 = dma.hbm_to_vmem [thread:$0]  %s166, 2048, %s168, %s157, 128, 128, 8
        $region28: #{hgnn_conv.2} parent=23 // pred_fallthru
          _
      $region24: #{hgnn_conv.2} parent=5 // pred_fallthru
        _
      %p174 = scmp.le.s32.totalorder 1, %s16
      %p175 = scmp.lt.s32.totalorder %s16, 3
      %p176 = pnand %p174, %p175
      %p177 = pneg %p176
      // Predicated region
      $region29: #{hgnn_conv.2} parent=5 // pred_check
        _
      $region30: #{hgnn_conv.2} parent=5 // pred_check_branch
        %179 = sbr.rel (%p176) target = $region32
      $region31: #{hgnn_conv.2} parent=5 // pred_region
        %s180 = ssub.s32 %s16, 1
        %s181 = sand.u32 %s29, 1
        %s182 = scalar_lea.sflag [#allocation3], %s181
        %s183 = sand.u32 %s29, 1
        %s184 = smul.addr %s183, 128
        %s185 = scalar_lea.vmem [#allocation2], %s184
        // Predicated region
        $region33: #{hgnn_conv.2} parent=31 // pred_check
          %p186 = pneg %p42
        $region34: #{hgnn_conv.2} parent=31 // pred_check_branch
          %188 = sbr.rel (%p186) target = $region36
        $region35: #{hgnn_conv.2} parent=31 // pred_region
          %189 = dma.done %s182, 2048
        $region36: #{hgnn_conv.2} parent=31 // pred_fallthru
          _
        // Predicated region
        $region37: #{hgnn_conv.2} parent=31 // pred_check
          %p190 = pneg %p63
        $region38: #{hgnn_conv.2} parent=31 // pred_check_branch
          %192 = sbr.rel (%p190) target = $region40
        $region39: #{hgnn_conv.2} parent=31 // pred_region
          %193 = dma.done [#allocation6], 768
        $region40: #{hgnn_conv.2} parent=31 // pred_fallthru
          _
        // Predicated region
        $region41: #{hgnn_conv.2} parent=31 // pred_check
          %p194 = pneg %p84
        $region42: #{hgnn_conv.2} parent=31 // pred_check_branch
          %196 = sbr.rel (%p194) target = $region44
        $region43: #{hgnn_conv.2} parent=31 // pred_region
          %197 = dma.done [#allocation6], 16
        $region44: #{hgnn_conv.2} parent=31 // pred_fallthru
          _
        %s198 = sand.u32 %s29, 1
        %s199 = scalar_lea.sflag [#allocation3], %s198
        %s200 = sand.u32 %s29, 1
        %s201 = smul.addr %s200, 128
        %s202 = scalar_lea.vmem [#allocation2], %s201
        %p203 = pneg %p42
        %p204 = pneg %p39
        %p205 = pneg %p63
        %p206 = pneg %p60
        %p207 = pneg %p84
        %p208 = pneg %p81
        %p209 = pneg %p110
        %p210 = pneg %p107
        %s211 = sand.u32 %s97, 1
        %s212 = scalar_lea.sflag [#allocation4], %s211
        %s213 = sand.u32 %s97, 1
        %s214 = smul.addr %s213, 128
        %s215 = scalar_lea.vmem [#allocation8], %s214
        %s216 = smul.u32 16, %s21
        %s217 = smul.u32 16, %s21
        %v218 = vld [vmem:[%s185] sm:$0xff]
        %v219 = vld [vmem:[%s185 + $0x8] sm:$0xff]
        %v220 = vld [vmem:[%s185 + $0x10] sm:$0xff]
        %v221 = vld [vmem:[%s185 + $0x18] sm:$0xff]
        %v222 = vld [vmem:[%s185 + $0x20] sm:$0xff]
        %v223 = vld [vmem:[%s185 + $0x28] sm:$0xff]
        %v224 = vld [vmem:[%s185 + $0x30] sm:$0xff]
        %v225 = vld [vmem:[%s185 + $0x38] sm:$0xff]
        %v226 = vld [vmem:[%s185 + $0x40] sm:$0xff]
        %v227 = vld [vmem:[%s185 + $0x48] sm:$0xff]
        %v228 = vld [vmem:[%s185 + $0x50] sm:$0xff]
        %v229 = vld [vmem:[%s185 + $0x58] sm:$0xff]
        %v230 = vld [vmem:[%s185 + $0x60] sm:$0xff]
        %v231 = vld [vmem:[%s185 + $0x68] sm:$0xff]
        %v232 = vld [vmem:[%s185 + $0x70] sm:$0xff]
        %v233 = vld [vmem:[%s185 + $0x78] sm:$0xff]
        %v234 = vld [vmem:[#allocation5] sm:$0xff]
        %v235 = vld [vmem:[#allocation5 + $0x8] sm:$0xff]
        %v236 = vld [vmem:[#allocation5 + $0x10] sm:$0xff]
        %v237 = vld [vmem:[#allocation5 + $0x18] sm:$0xff]
        %v238 = vld [vmem:[#allocation5 + $0x20] sm:$0xff]
        %v239 = vld [vmem:[#allocation5 + $0x28] sm:$0xff]
        %v240 = vld [vmem:[#allocation7] sm:$0x1]
        %v242 = vlaneseq
        %v243 = vshrl.u32 %v242, 7
        %v244 = vsub.s32 0, %v243
        %v245 = vrot.slane %v240, %v244
        %vm247 = vcmask 392192
        %v249 = vsel %vm247, %v218, 0
        %v252 = vsel %vm247, %v219, 0
        %v255 = vsel %vm247, %v220, 0
        %v258 = vsel %vm247, %v221, 0
        %v261 = vsel %vm247, %v222, 0
        %v264 = vsel %vm247, %v223, 0
        %v267 = vsel %vm247, %v224, 0
        %v270 = vsel %vm247, %v225, 0
        %v273 = vsel %vm247, %v226, 0
        %v276 = vsel %vm247, %v227, 0
        %v279 = vsel %vm247, %v228, 0
        %v282 = vsel %vm247, %v229, 0
        %v285 = vsel %vm247, %v230, 0
        %v288 = vsel %vm247, %v231, 0
        %v291 = vsel %vm247, %v232, 0
        %v294 = vsel %vm247, %v233, 0
        %296 = vmatprep.subr.mxu0 0.0
        %297 = vmatpush1.msra.mxu0 %v234
        %298 = vmatprep.subr.mxu0 0.0
        %299 = vmatpush1.msra.mxu0 %v235
        %300 = vmatprep.subr.mxu0 0.0
        %301 = vmatpush1.msra.mxu0 %v236
        %302 = vmatprep.subr.mxu0 0.0
        %303 = vmatpush1.msra.mxu0 %v237
        %304 = vmatprep.subr.mxu0 0.0
        %305 = vmatpush1.msra.mxu0 %v238
        %306 = vmatprep.subr.mxu0 0.0
        %307 = vmatpush1.msra.mxu0 %v239
        %308 = vmatprep.subr.mxu0 0.0
        %309 = vmatpush1.msra.mxu0 0.0
        %310 = vmatprep.subr.mxu0 0.0
        %311 = vmatpush1.msra.mxu0 0.0
        %312 = vmatprep.subr.mxu0 0.0
        %313 = vmatpush1.msra.mxu0 0.0
        %314 = vmatprep.subr.mxu0 0.0
        %315 = vmatpush1.msra.mxu0 0.0
        %316 = vmatprep.subr.mxu0 0.0
        %317 = vmatpush1.msra.mxu0 0.0
        %318 = vmatprep.subr.mxu0 0.0
        %319 = vmatpush1.msra.mxu0 0.0
        %320 = vmatprep.subr.mxu0 0.0
        %321 = vmatpush1.msra.mxu0 0.0
        %322 = vmatprep.subr.mxu0 0.0
        %323 = vmatpush1.msra.mxu0 0.0
        %324 = vmatprep.subr.mxu0 0.0
        %325 = vmatpush1.msra.mxu0 0.0
        %326 = vmatprep.subr.mxu0 0.0
        %327 = vmatpush1.msra.mxu0 0.0
        %328 = vmatprep.subr.mxu0 0.0
        %329 = vmatpush1.msra.mxu0 0.0
        %330 = vmatprep.subr.mxu0 0.0
        %331 = vmatpush1.msra.mxu0 0.0
        %332 = vmatprep.subr.mxu0 0.0
        %333 = vmatpush1.msra.mxu0 0.0
        %334 = vmatprep.subr.mxu0 0.0
        %335 = vmatpush1.msra.mxu0 0.0
        %336 = vmatprep.subr.mxu0 0.0
        %337 = vmatpush1.msra.mxu0 0.0
        %338 = vmatprep.subr.mxu0 0.0
        %339 = vmatpush1.msra.mxu0 0.0
        %340 = vmatprep.subr.mxu0 0.0
        %341 = vmatpush1.msra.mxu0 0.0
        %342 = vmatprep.subr.mxu0 0.0
        %343 = vmatpush1.msra.mxu0 0.0
        %344 = vmatprep.subr.mxu0 0.0
        %345 = vmatpush1.msra.mxu0 0.0
        %346 = vmatprep.subr.mxu0 0.0
        %347 = vmatpush1.msra.mxu0 0.0
        %348 = vmatprep.subr.mxu0 0.0
        %349 = vmatpush1.msra.mxu0 0.0
        %350 = vmatprep.subr.mxu0 0.0
        %351 = vmatpush1.msra.mxu0 0.0
        %352 = vmatprep.subr.mxu0 0.0
        %353 = vmatpush1.msra.mxu0 0.0
        %354 = vmatprep.subr.mxu0 0.0
        %355 = vmatpush1.msra.mxu0 0.0
        %356 = vmatprep.subr.mxu0 0.0
        %357 = vmatpush1.msra.mxu0 0.0
        %358 = vmatprep.subr.mxu0 0.0
        %359 = vmatpush1.msra.mxu0 0.0
        %360 = vmatprep.mubr.f32.mxu0 0.0
        %361 = vmatmul.mubr.f32.gmra.mrb[0].mxu0 %v249
        %v362 = vpop.f32.mrb[0].mxu0
        %v363 = vadd.f32 %v245, %v362
        %v364 = vpop.f32.mrb[0].mxu0
        %365 = vmatprep.mubr.f32.mxu0 0.0
        %366 = vmatmul.mubr.f32.gmra.mrb[0].mxu0 %v252
        %v367 = vpop.f32.mrb[0].mxu0
        %v368 = vadd.f32 %v245, %v367
        %v369 = vpop.f32.mrb[0].mxu0
        %370 = vmatprep.mubr.f32.mxu0 0.0
        %371 = vmatmul.mubr.f32.gmra.mrb[0].mxu0 %v255
        %v372 = vpop.f32.mrb[0].mxu0
        %v373 = vadd.f32 %v245, %v372
        %v374 = vpop.f32.mrb[0].mxu0
        %375 = vmatprep.mubr.f32.mxu0 0.0
        %376 = vmatmul.mubr.f32.gmra.mrb[0].mxu0 %v258
        %v377 = vpop.f32.mrb[0].mxu0
        %v378 = vadd.f32 %v245, %v377
        %v379 = vpop.f32.mrb[0].mxu0
        %380 = vmatprep.mubr.f32.mxu0 0.0
        %381 = vmatmul.mubr.f32.gmra.mrb[0].mxu0 %v261
        %v382 = vpop.f32.mrb[0].mxu0
        %v383 = vadd.f32 %v245, %v382
        %v384 = vpop.f32.mrb[0].mxu0
        %385 = vmatprep.mubr.f32.mxu0 0.0
        %386 = vmatmul.mubr.f32.gmra.mrb[0].mxu0 %v264
        %v387 = vpop.f32.mrb[0].mxu0
        %v388 = vadd.f32 %v245, %v387
        %v389 = vpop.f32.mrb[0].mxu0
        %390 = vmatprep.mubr.f32.mxu0 0.0
        %391 = vmatmul.mubr.f32.gmra.mrb[0].mxu0 %v267
        %v392 = vpop.f32.mrb[0].mxu0
        %v393 = vadd.f32 %v245, %v392
        %v394 = vpop.f32.mrb[0].mxu0
        %395 = vmatprep.mubr.f32.mxu0 0.0
        %396 = vmatmul.mubr.f32.gmra.mrb[0].mxu0 %v270
        %v397 = vpop.f32.mrb[0].mxu0
        %v398 = vadd.f32 %v245, %v397
        %v399 = vpop.f32.mrb[0].mxu0
        %400 = vmatprep.mubr.f32.mxu0 0.0
        %401 = vmatmul.mubr.f32.gmra.mrb[0].mxu0 %v273
        %v402 = vpop.f32.mrb[0].mxu0
        %v403 = vadd.f32 %v245, %v402
        %v404 = vpop.f32.mrb[0].mxu0
        %405 = vmatprep.mubr.f32.mxu0 0.0
        %406 = vmatmul.mubr.f32.gmra.mrb[0].mxu0 %v276
        %v407 = vpop.f32.mrb[0].mxu0
        %v408 = vadd.f32 %v245, %v407
        %v409 = vpop.f32.mrb[0].mxu0
        %410 = vmatprep.mubr.f32.mxu0 0.0
        %411 = vmatmul.mubr.f32.gmra.mrb[0].mxu0 %v279
        %v412 = vpop.f32.mrb[0].mxu0
        %v413 = vadd.f32 %v245, %v412
        %v414 = vpop.f32.mrb[0].mxu0
        %415 = vmatprep.mubr.f32.mxu0 0.0
        %416 = vmatmul.mubr.f32.gmra.mrb[0].mxu0 %v282
        %v417 = vpop.f32.mrb[0].mxu0
        %v418 = vadd.f32 %v245, %v417
        %v419 = vpop.f32.mrb[0].mxu0
        %420 = vmatprep.mubr.f32.mxu0 0.0
        %421 = vmatmul.mubr.f32.gmra.mrb[0].mxu0 %v285
        %v422 = vpop.f32.mrb[0].mxu0
        %v423 = vadd.f32 %v245, %v422
        %v424 = vpop.f32.mrb[0].mxu0
        %425 = vmatprep.mubr.f32.mxu0 0.0
        %426 = vmatmul.mubr.f32.gmra.mrb[0].mxu0 %v288
        %v427 = vpop.f32.mrb[0].mxu0
        %v428 = vadd.f32 %v245, %v427
        %v429 = vpop.f32.mrb[0].mxu0
        %430 = vmatprep.mubr.f32.mxu0 0.0
        %431 = vmatmul.mubr.f32.gmra.mrb[0].mxu0 %v291
        %v432 = vpop.f32.mrb[0].mxu0
        %v433 = vadd.f32 %v245, %v432
        %v434 = vpop.f32.mrb[0].mxu0
        %435 = vmatprep.mubr.f32.mxu0 0.0
        %436 = vmatmul.mubr.f32.gmra.mrb[0].mxu0 %v294
        %v437 = vpop.f32.mrb[0].mxu0
        %v438 = vadd.f32 %v245, %v437
        %v439 = vpop.f32.mrb[0].mxu0
        %440 = vdwg.mxu0
        %441 = vst [vmem:[%s215] sm:$0xff] %v363
        %442 = vst [vmem:[%s215 + $0x8] sm:$0xff] %v368
        %443 = vst [vmem:[%s215 + $0x10] sm:$0xff] %v373
        %444 = vst [vmem:[%s215 + $0x18] sm:$0xff] %v378
        %445 = vst [vmem:[%s215 + $0x20] sm:$0xff] %v383
        %446 = vst [vmem:[%s215 + $0x28] sm:$0xff] %v388
        %447 = vst [vmem:[%s215 + $0x30] sm:$0xff] %v393
        %448 = vst [vmem:[%s215 + $0x38] sm:$0xff] %v398
        %449 = vst [vmem:[%s215 + $0x40] sm:$0xff] %v403
        %450 = vst [vmem:[%s215 + $0x48] sm:$0xff] %v408
        %451 = vst [vmem:[%s215 + $0x50] sm:$0xff] %v413
        %452 = vst [vmem:[%s215 + $0x58] sm:$0xff] %v418
        %453 = vst [vmem:[%s215 + $0x60] sm:$0xff] %v423
        %454 = vst [vmem:[%s215 + $0x68] sm:$0xff] %v428
        %455 = vst [vmem:[%s215 + $0x70] sm:$0xff] %v433
        %456 = vst [vmem:[%s215 + $0x78] sm:$0xff] %v438
        %s457 = sand.u32 %s97, 1
        %s458 = scalar_lea.sflag [#allocation4], %s457
        %s459 = sand.u32 %s97, 1
        %s460 = smul.addr %s459, 128
        %s461 = scalar_lea.vmem [#allocation8], %s460
        // Predicated region
        $region45: #{hgnn_conv.2} parent=31 // pred_check
          %p462 = pneg %p107
        $region46: #{hgnn_conv.2} parent=31 // pred_check_branch
          %464 = sbr.rel (%p462) target = $region48
        $region47: #{hgnn_conv.2} parent=31 // pred_region
          %s465 = smul.u32 16, %s21
          %s467 = ssub.s32 2048, 2048
          %468 = vsyncadd %s458, %s467
          %s469 = smul.addr %s465, 128
          %s470 = scalar_lea.hbm %s3, %s469
          %s471 = sshll.u32 %s461, 4
          %s472 = int_to_ptr.vmem [resolvable:$true] %s471
          %477 = dma.vmem_to_hbm [thread:$0]  %s472, 2048, %s470, %s458, 128, 128, 8
        $region48: #{hgnn_conv.2} parent=31 // pred_fallthru
          _
      $region32: #{hgnn_conv.2} parent=5 // pred_fallthru
        _
      %p478 = scmp.le.s32.totalorder 2, %s16
      // Predicated region
      $region49: #{hgnn_conv.2} parent=5 // pred_check
        %p479 = pneg %p478
      $region50: #{hgnn_conv.2} parent=5 // pred_check_branch
        %481 = sbr.rel (%p479) target = $region52
      $region51: #{hgnn_conv.2} parent=5 // pred_region
        %s482 = ssub.s32 %s16, 2
        // Predicated region
        $region53: #{hgnn_conv.2} parent=51 // pred_check
          %p483 = pneg %p113
        $region54: #{hgnn_conv.2} parent=51 // pred_check_branch
          %485 = sbr.rel (%p483) target = $region56
        $region55: #{hgnn_conv.2} parent=51 // pred_region
          %s486 = sand.u32 %s98, 1
          %s487 = scalar_lea.sflag [#allocation4], %s486
          %s488 = sand.u32 %s98, 1
          %s489 = smul.addr %s488, 128
          %s490 = scalar_lea.vmem [#allocation8], %s489
          %491 = dma.done %s487, 2048
        $region56: #{hgnn_conv.2} parent=51 // pred_fallthru
          _
      $region52: #{hgnn_conv.2} parent=5 // pred_fallthru
        _
    $region6: #{hgnn_conv.2} parent=1 // loop_footer
      %s20 = sadd.s32 1, %s16
    $region7: #{hgnn_conv.2} parent=1 // loop_footer_branch
      %15 = sbr.rel target = $region3
    $region8: #{hgnn_conv.2} parent=1 // loop_exit
      _
    %492 = vsyncpa [#allocation3], 1
    %s493 = scalar_lea.sflag [#allocation3], 1
    %494 = vsyncpa %s493, 1
    %495 = vsyncpa [#allocation6], 1
    %496 = vsyncpa [#allocation4], 1
    %s497 = scalar_lea.sflag [#allocation4], 1
    %498 = vsyncpa %s497, 1

// kernel: hgnn_conv.3
$region0: #{hgnn_conv.3}
  #allocation0 [shape = 'u32[]', space=smem, size = 0x4, offset = 0x4, fixed_abs, tag = 'smem constant byte address 0x4 - core index']
  #allocation1 [shape = 'u32[144,128]{1,0:T(1,128)}', space=vmem, size = 0x12000, scoped, tag = 'internal scratch']
  #allocation2 [shape = 'f32[128,128]{1,0:T(8,128)}', space=vmem, size = 0x10000, scoped, tag = 'scratch operand']
  %s0 = inlined_call_operand.hbm [shape: f32[256,256], index: 0, kind: input, shape index: {}]
  %s1 = inlined_call_operand.hbm [shape: f32[256,128], index: 1, kind: input, shape index: {}]
  %s2 = inlined_call_operand.hbm [shape: f32[256,128], index: 2, kind: output, shape index: {}]
  %s3 = sld [smem:[#allocation0]]
  $region57: #{hgnn_conv.3} parent=0
    _
  %s5 = ssub.s32 1, %s3
  %s6 = scalar_select 0, %s5, %s3
  $region1: #{hgnn_conv.3} parent=0
    #allocation3 [shape = 'u8[131072]{0}', space=vmem, size = 0x20000, scoped, tag = 'input window, operand 0']
    #allocation4 [shape = 's32[2]{0}', space=sflag, size = 0x8, scoped, tag = 'scoped memory for hgnn_conv.3']
    #allocation5 [shape = 's32[2]{0}', space=sflag, size = 0x8, scoped, tag = 'scoped memory for hgnn_conv.3']
    #allocation6 [shape = 'u8[131072]{0}', space=vmem, size = 0x20000, scoped, tag = 'input window, operand 1']
    #allocation7 [shape = 's32[2]{0}', space=sflag, size = 0x8, scoped, tag = 'scoped memory for hgnn_conv.3']
    #allocation8 [shape = 'u8[131072]{0}', space=vmem, size = 0x20000, scoped, tag = 'output window, operand 0']
    %7 = vsyncpa [#allocation4], 0
    %s8 = scalar_lea.sflag [#allocation4], 1
    %9 = vsyncpa %s8, 0
    %10 = vsyncpa [#allocation7], 0
    %s11 = scalar_lea.sflag [#allocation7], 1
    %12 = vsyncpa %s11, 0
    %13 = vsyncpa [#allocation5], 0
    %s14 = scalar_lea.sflag [#allocation5], 1
    %15 = vsyncpa %s14, 0
    loop: start=0, step=1, limit=6
    $region2: #{hgnn_conv.3} parent=1 // loop_pre_header
      _
    $region3: #{hgnn_conv.3} parent=1 // loop_header
      %s17 = sphi 0, %s21
      %p18 = scmp.ge.s32.totalorder %s17, 6
      %s24 = sphi 0, %s36
      %s25 = sphi 0, %s32
      %s26 = sphi 0, %s24
      %s27 = sphi 0, %s25
      %s28 = sphi 0, %s26
      %s29 = sphi 0, %s27
      %s41 = sphi 0, %s43
      %s44 = sphi 0, %s41
      %s45 = sphi 0, %s44
      %s61 = sphi 0, %s45
      %s67 = sphi 0, %s69
      %s70 = sphi 0, %s67
      %s71 = sphi 0, %s70
      %s87 = sphi 0, %s71
      %s93 = sphi 0, %s95
      %s96 = sphi 0, %s93
      %s97 = sphi 0, %s96
      %s113 = sphi 0, %s97
    $region4: #{hgnn_conv.3} parent=1 // loop_header_branch
      %20 = sbr.rel (%p18) target = $region8
    $region5: #{hgnn_conv.3} parent=1 // loop_body
      %s22 = ssub.s32 %s17, 1
      %s23 = ssub.s32 %s17, 2
      %s30 = sadd.s32 1, %s25
      %p31 = scmp.ge.s32.totalorder %s30, 2
      %s32 = scalar_select %p31, 0, %s30
      %s33 = sadd.s32 1, %s24
      %s34 = scalar_select %p31, %s33, %s24
      %p35 = scmp.ge.s32.totalorder %s34, 2
      %s36 = scalar_select %p35, 0, %s34
      %s37 = ssub.s32 %s24, %s36
      %s38 = ssub.s32 %s25, %s32
      %s39 = sor.u32 %s37, %s38
      %p40 = scmp.eq.s32.totalorder %s39, 0
      %s42 = sadd.s32 %s41, 1
      %s43 = scalar_select %p40, %s41, %s42
      %p46 = pneg %p40
      %p47 = scmp.eq.s32.totalorder %s17, 3
      %p48 = por %p46, %p47
      %p49 = scmp.ne.s32.totalorder %s41, %s44
      %p50 = scmp.eq.s32.totalorder %s17, 0
      %p51 = por %p49, %p50
      %p52 = scmp.ne.s32.totalorder %s41, %s44
      %p53 = scmp.eq.s32.totalorder %s22, 3
      %p54 = por %p52, %p53
      %p55 = scmp.ne.s32.totalorder %s44, %s45
      %p56 = scmp.eq.s32.totalorder %s22, 0
      %p57 = por %p55, %p56
      %p58 = scmp.ne.s32.totalorder %s44, %s45
      %p59 = scmp.eq.s32.totalorder %s23, 3
      %p60 = por %p58, %p59
      %p62 = scmp.ne.s32.totalorder %s45, %s61
      %p63 = scmp.eq.s32.totalorder %s23, 0
      %p64 = por %p62, %p63
      %s65 = ssub.s32 %s25, %s32
      %p66 = scmp.eq.s32.totalorder %s65, 0
      %s68 = sadd.s32 %s67, 1
      %s69 = scalar_select %p66, %s67, %s68
      %p72 = pneg %p66
      %p73 = scmp.eq.s32.totalorder %s17, 3
      %p74 = por %p72, %p73
      %p75 = scmp.ne.s32.totalorder %s67, %s70
      %p76 = scmp.eq.s32.totalorder %s17, 0
      %p77 = por %p75, %p76
      %p78 = scmp.ne.s32.totalorder %s67, %s70
      %p79 = scmp.eq.s32.totalorder %s22, 3
      %p80 = por %p78, %p79
      %p81 = scmp.ne.s32.totalorder %s70, %s71
      %p82 = scmp.eq.s32.totalorder %s22, 0
      %p83 = por %p81, %p82
      %p84 = scmp.ne.s32.totalorder %s70, %s71
      %p85 = scmp.eq.s32.totalorder %s23, 3
      %p86 = por %p84, %p85
      %p88 = scmp.ne.s32.totalorder %s71, %s87
      %p89 = scmp.eq.s32.totalorder %s23, 0
      %p90 = por %p88, %p89
      %s91 = ssub.s32 %s24, %s36
      %p92 = scmp.eq.s32.totalorder %s91, 0
      %s94 = sadd.s32 %s93, 1
      %s95 = scalar_select %p92, %s93, %s94
      %p98 = pneg %p92
      %p99 = scmp.eq.s32.totalorder %s17, 3
      %p100 = por %p98, %p99
      %p101 = scmp.ne.s32.totalorder %s93, %s96
      %p102 = scmp.eq.s32.totalorder %s17, 0
      %p103 = por %p101, %p102
      %p104 = scmp.ne.s32.totalorder %s93, %s96
      %p105 = scmp.eq.s32.totalorder %s22, 3
      %p106 = por %p104, %p105
      %p107 = scmp.ne.s32.totalorder %s96, %s97
      %p108 = scmp.eq.s32.totalorder %s22, 0
      %p109 = por %p107, %p108
      %p110 = scmp.ne.s32.totalorder %s96, %s97
      %p111 = scmp.eq.s32.totalorder %s23, 3
      %p112 = por %p110, %p111
      %p114 = scmp.ne.s32.totalorder %s97, %s113
      %p115 = scmp.eq.s32.totalorder %s23, 0
      %p116 = por %p114, %p115
      %p117 = scmp.le.s32.totalorder 1, %s17
      %p118 = scmp.lt.s32.totalorder %s17, 5
      %p119 = pnand %p117, %p118
      %p120 = pneg %p119
      // Predicated region
      $region9: #{hgnn_conv.3} parent=5 // pred_check
        _
      $region10: #{hgnn_conv.3} parent=5 // pred_check_branch
        %122 = sbr.rel (%p119) target = $region12
      $region11: #{hgnn_conv.3} parent=5 // pred_region
        %s123 = ssub.s32 %s17, 1
      $region12: #{hgnn_conv.3} parent=5 // pred_fallthru
        _
      %p124 = scmp.lt.s32.totalorder %s17, 4
      // Predicated region
      $region13: #{hgnn_conv.3} parent=5 // pred_check
        %p125 = pneg %p124
      $region14: #{hgnn_conv.3} parent=5 // pred_check_branch
        %127 = sbr.rel (%p125) target = $region16
      $region15: #{hgnn_conv.3} parent=5 // pred_region
        // Predicated region
        $region17: #{hgnn_conv.3} parent=15 // pred_check
          %p128 = pneg %p51
        $region18: #{hgnn_conv.3} parent=15 // pred_check_branch
          %130 = sbr.rel (%p128) target = $region20
        $region19: #{hgnn_conv.3} parent=15 // pred_region
          %s131 = sand.u32 %s41, 1
          %s132 = scalar_lea.sflag [#allocation4], %s131
          %s133 = sand.u32 %s41, 1
          %s134 = smul.addr %s133, 128
          %s135 = scalar_lea.vmem [#allocation3], %s134
          %s136 = smul.u32 16, %s24
          %s138 = ssub.s32 2048, 2048
          %139 = vsyncadd %s132, %s138
          %s140 = smul.addr %s136, 2
          %s141 = sadd.s32 %s25, %s140
          %s142 = smul.addr %s141, 128
          %s143 = scalar_lea.hbm %s0, %s142
          %s144 = sshll.u32 %s135, 4
          %s145 = int_to_ptr.vmem [resolvable:$true] %s144
          %150 = dma.hbm_to_vmem [thread:$0]  %s143, 2048, %s145, %s132, 256, 128, 8
        $region20: #{hgnn_conv.3} parent=15 // pred_fallthru
          _
        // Predicated region
        $region21: #{hgnn_conv.3} parent=15 // pred_check
          %p151 = pneg %p77
        $region22: #{hgnn_conv.3} parent=15 // pred_check_branch
          %153 = sbr.rel (%p151) target = $region24
        $region23: #{hgnn_conv.3} parent=15 // pred_region
          %s154 = sand.u32 %s67, 1
          %s155 = scalar_lea.sflag [#allocation7], %s154
          %s156 = sand.u32 %s67, 1
          %s157 = smul.addr %s156, 128
          %s158 = scalar_lea.vmem [#allocation6], %s157
          %s159 = smul.u32 16, %s25
          %s161 = ssub.s32 2048, 2048
          %162 = vsyncadd %s155, %s161
          %s163 = smul.addr %s159, 128
          %s164 = scalar_lea.hbm %s1, %s163
          %s165 = sshll.u32 %s158, 4
          %s166 = int_to_ptr.vmem [resolvable:$true] %s165
          %171 = dma.hbm_to_vmem [thread:$0]  %s164, 2048, %s166, %s155, 128, 128, 8
        $region24: #{hgnn_conv.3} parent=15 // pred_fallthru
          _
      $region16: #{hgnn_conv.3} parent=5 // pred_fallthru
        _
      %p172 = scmp.le.s32.totalorder 1, %s17
      %p173 = scmp.lt.s32.totalorder %s17, 5
      %p174 = pnand %p172, %p173
      %p175 = pneg %p174
      // Predicated region
      $region25: #{hgnn_conv.3} parent=5 // pred_check
        _
      $region26: #{hgnn_conv.3} parent=5 // pred_check_branch
        %177 = sbr.rel (%p174) target = $region28
      $region27: #{hgnn_conv.3} parent=5 // pred_region
        %s178 = ssub.s32 %s17, 1
        %s179 = sand.u32 %s44, 1
        %s180 = scalar_lea.sflag [#allocation4], %s179
        %s181 = sand.u32 %s44, 1
        %s182 = smul.addr %s181, 128
        %s183 = scalar_lea.vmem [#allocation3], %s182
        // Predicated region
        $region29: #{hgnn_conv.3} parent=27 // pred_check
          %p184 = pneg %p57
        $region30: #{hgnn_conv.3} parent=27 // pred_check_branch
          %186 = sbr.rel (%p184) target = $region32
        $region31: #{hgnn_conv.3} parent=27 // pred_region
          %187 = dma.done %s180, 2048
        $region32: #{hgnn_conv.3} parent=27 // pred_fallthru
          _
        %s188 = sand.u32 %s70, 1
        %s189 = scalar_lea.sflag [#allocation7], %s188
        %s190 = sand.u32 %s70, 1
        %s191 = smul.addr %s190, 128
        %s192 = scalar_lea.vmem [#allocation6], %s191
        // Predicated region
        $region33: #{hgnn_conv.3} parent=27 // pred_check
          %p193 = pneg %p83
        $region34: #{hgnn_conv.3} parent=27 // pred_check_branch
          %195 = sbr.rel (%p193) target = $region36
        $region35: #{hgnn_conv.3} parent=27 // pred_region
          %196 = dma.done %s189, 2048
        $region36: #{hgnn_conv.3} parent=27 // pred_fallthru
          _
        %s197 = sand.u32 %s44, 1
        %s198 = scalar_lea.sflag [#allocation4], %s197
        %s199 = sand.u32 %s44, 1
        %s200 = smul.addr %s199, 128
        %s201 = scalar_lea.vmem [#allocation3], %s200
        %p202 = pneg %p57
        %p203 = pneg %p54
        %s204 = sand.u32 %s70, 1
        %s205 = scalar_lea.sflag [#allocation7], %s204
        %s206 = sand.u32 %s70, 1
        %s207 = smul.addr %s206, 128
        %s208 = scalar_lea.vmem [#allocation6], %s207
        %p209 = pneg %p83
        %p210 = pneg %p80
        %p211 = pneg %p109
        %p212 = pneg %p106
        %s213 = sand.u32 %s96, 1
        %s214 = scalar_lea.sflag [#allocation5], %s213
        %s215 = sand.u32 %s96, 1
        %s216 = smul.addr %s215, 128
        %s217 = scalar_lea.vmem [#allocation8], %s216
        %s218 = smul.u32 16, %s26
        %s219 = smul.u32 16, %s27
        %s220 = smul.u32 16, %s26
        %p221 = scmp.eq.s32.totalorder %s27, 0
        // Predicated region
        $region37: #{hgnn_conv.3} parent=27 // pred_check
          %p222 = pneg %p221
        $region38: #{hgnn_conv.3} parent=27 // pred_check_branch
          %224 = sbr.rel (%p222) target = $region40
        $region39: #{hgnn_conv.3} parent=27 // pred_region
          %225 = vst [vmem:[#allocation2] sm:$0xff] 0.0
          %226 = vst [vmem:[#allocation2 + $0x8] sm:$0xff] 0.0
          %227 = vst [vmem:[#allocation2 + $0x10] sm:$0xff] 0.0
          %228 = vst [vmem:[#allocation2 + $0x18] sm:$0xff] 0.0
          %229 = vst [vmem:[#allocation2 + $0x20] sm:$0xff] 0.0
          %230 = vst [vmem:[#allocation2 + $0x28] sm:$0xff] 0.0
          %231 = vst [vmem:[#allocation2 + $0x30] sm:$0xff] 0.0
          %232 = vst [vmem:[#allocation2 + $0x38] sm:$0xff] 0.0
          %233 = vst [vmem:[#allocation2 + $0x40] sm:$0xff] 0.0
          %234 = vst [vmem:[#allocation2 + $0x48] sm:$0xff] 0.0
          %235 = vst [vmem:[#allocation2 + $0x50] sm:$0xff] 0.0
          %236 = vst [vmem:[#allocation2 + $0x58] sm:$0xff] 0.0
          %237 = vst [vmem:[#allocation2 + $0x60] sm:$0xff] 0.0
          %238 = vst [vmem:[#allocation2 + $0x68] sm:$0xff] 0.0
          %239 = vst [vmem:[#allocation2 + $0x70] sm:$0xff] 0.0
          %240 = vst [vmem:[#allocation2 + $0x78] sm:$0xff] 0.0
        $region40: #{hgnn_conv.3} parent=27 // pred_fallthru
          _
        %v241 = vld [vmem:[#allocation2] sm:$0xff]
        %v242 = vld [vmem:[#allocation2 + $0x8] sm:$0xff]
        %v243 = vld [vmem:[#allocation2 + $0x10] sm:$0xff]
        %v244 = vld [vmem:[#allocation2 + $0x18] sm:$0xff]
        %v245 = vld [vmem:[#allocation2 + $0x20] sm:$0xff]
        %v246 = vld [vmem:[#allocation2 + $0x28] sm:$0xff]
        %v247 = vld [vmem:[#allocation2 + $0x30] sm:$0xff]
        %v248 = vld [vmem:[#allocation2 + $0x38] sm:$0xff]
        %v249 = vld [vmem:[#allocation2 + $0x40] sm:$0xff]
        %v250 = vld [vmem:[#allocation2 + $0x48] sm:$0xff]
        %v251 = vld [vmem:[#allocation2 + $0x50] sm:$0xff]
        %v252 = vld [vmem:[#allocation2 + $0x58] sm:$0xff]
        %v253 = vld [vmem:[#allocation2 + $0x60] sm:$0xff]
        %v254 = vld [vmem:[#allocation2 + $0x68] sm:$0xff]
        %v255 = vld [vmem:[#allocation2 + $0x70] sm:$0xff]
        %v256 = vld [vmem:[#allocation2 + $0x78] sm:$0xff]
        %v257 = vld [vmem:[%s183] sm:$0xff]
        %v258 = vld [vmem:[%s183 + $0x8] sm:$0xff]
        %v259 = vld [vmem:[%s183 + $0x10] sm:$0xff]
        %v260 = vld [vmem:[%s183 + $0x18] sm:$0xff]
        %v261 = vld [vmem:[%s183 + $0x20] sm:$0xff]
        %v262 = vld [vmem:[%s183 + $0x28] sm:$0xff]
        %v263 = vld [vmem:[%s183 + $0x30] sm:$0xff]
        %v264 = vld [vmem:[%s183 + $0x38] sm:$0xff]
        %v265 = vld [vmem:[%s183 + $0x40] sm:$0xff]
        %v266 = vld [vmem:[%s183 + $0x48] sm:$0xff]
        %v267 = vld [vmem:[%s183 + $0x50] sm:$0xff]
        %v268 = vld [vmem:[%s183 + $0x58] sm:$0xff]
        %v269 = vld [vmem:[%s183 + $0x60] sm:$0xff]
        %v270 = vld [vmem:[%s183 + $0x68] sm:$0xff]
        %v271 = vld [vmem:[%s183 + $0x70] sm:$0xff]
        %v272 = vld [vmem:[%s183 + $0x78] sm:$0xff]
        %v273 = vld [vmem:[%s192] sm:$0xff]
        %v274 = vld [vmem:[%s192 + $0x8] sm:$0xff]
        %v275 = vld [vmem:[%s192 + $0x10] sm:$0xff]
        %v276 = vld [vmem:[%s192 + $0x18] sm:$0xff]
        %v277 = vld [vmem:[%s192 + $0x20] sm:$0xff]
        %v278 = vld [vmem:[%s192 + $0x28] sm:$0xff]
        %v279 = vld [vmem:[%s192 + $0x30] sm:$0xff]
        %v280 = vld [vmem:[%s192 + $0x38] sm:$0xff]
        %v281 = vld [vmem:[%s192 + $0x40] sm:$0xff]
        %v282 = vld [vmem:[%s192 + $0x48] sm:$0xff]
        %v283 = vld [vmem:[%s192 + $0x50] sm:$0xff]
        %v284 = vld [vmem:[%s192 + $0x58] sm:$0xff]
        %v285 = vld [vmem:[%s192 + $0x60] sm:$0xff]
        %v286 = vld [vmem:[%s192 + $0x68] sm:$0xff]
        %v287 = vld [vmem:[%s192 + $0x70] sm:$0xff]
        %v288 = vld [vmem:[%s192 + $0x78] sm:$0xff]
        %289 = vmatprep.subr.mxu0 0.0
        %290 = vmatpush1.msra.mxu0 %v273
        %291 = vmatprep.subr.mxu0 0.0
        %292 = vmatpush1.msra.mxu0 %v274
        %293 = vmatprep.subr.mxu0 0.0
        %294 = vmatpush1.msra.mxu0 %v275
        %295 = vmatprep.subr.mxu0 0.0
        %296 = vmatpush1.msra.mxu0 %v276
        %297 = vmatprep.subr.mxu0 0.0
        %298 = vmatpush1.msra.mxu0 %v277
        %299 = vmatprep.subr.mxu0 0.0
        %300 = vmatpush1.msra.mxu0 %v278
        %301 = vmatprep.subr.mxu0 0.0
        %302 = vmatpush1.msra.mxu0 %v279
        %303 = vmatprep.subr.mxu0 0.0
        %304 = vmatpush1.msra.mxu0 %v280
        %305 = vmatprep.subr.mxu0 0.0
        %306 = vmatpush1.msra.mxu0 %v281
        %307 = vmatprep.subr.mxu0 0.0
        %308 = vmatpush1.msra.mxu0 %v282
        %309 = vmatprep.subr.mxu0 0.0
        %310 = vmatpush1.msra.mxu0 %v283
        %311 = vmatprep.subr.mxu0 0.0
        %312 = vmatpush1.msra.mxu0 %v284
        %313 = vmatprep.subr.mxu0 0.0
        %314 = vmatpush1.msra.mxu0 %v285
        %315 = vmatprep.subr.mxu0 0.0
        %316 = vmatpush1.msra.mxu0 %v286
        %317 = vmatprep.subr.mxu0 0.0
        %318 = vmatpush1.msra.mxu0 %v287
        %319 = vmatprep.subr.mxu0 0.0
        %320 = vmatpush1.msra.mxu0 %v288
        %321 = vmatprep.subr.mxu0 0.0
        %322 = vmatpush1.msra.mxu0 0.0
        %323 = vmatprep.subr.mxu0 0.0
        %324 = vmatpush1.msra.mxu0 0.0
        %325 = vmatprep.subr.mxu0 0.0
        %326 = vmatpush1.msra.mxu0 0.0
        %327 = vmatprep.subr.mxu0 0.0
        %328 = vmatpush1.msra.mxu0 0.0
        %329 = vmatprep.subr.mxu0 0.0
        %330 = vmatpush1.msra.mxu0 0.0
        %331 = vmatprep.subr.mxu0 0.0
        %332 = vmatpush1.msra.mxu0 0.0
        %333 = vmatprep.subr.mxu0 0.0
        %334 = vmatpush1.msra.mxu0 0.0
        %335 = vmatprep.subr.mxu0 0.0
        %336 = vmatpush1.msra.mxu0 0.0
        %337 = vmatprep.subr.mxu0 0.0
        %338 = vmatpush1.msra.mxu0 0.0
        %339 = vmatprep.subr.mxu0 0.0
        %340 = vmatpush1.msra.mxu0 0.0
        %341 = vmatprep.subr.mxu0 0.0
        %342 = vmatpush1.msra.mxu0 0.0
        %343 = vmatprep.subr.mxu0 0.0
        %344 = vmatpush1.msra.mxu0 0.0
        %345 = vmatprep.subr.mxu0 0.0
        %346 = vmatpush1.msra.mxu0 0.0
        %347 = vmatprep.subr.mxu0 0.0
        %348 = vmatpush1.msra.mxu0 0.0
        %349 = vmatprep.subr.mxu0 0.0
        %350 = vmatpush1.msra.mxu0 0.0
        %351 = vmatprep.subr.mxu0 0.0
        %352 = vmatpush1.msra.mxu0 0.0
        %353 = vmatprep.mubr.f32.mxu0 0.0
        %354 = vmatmul.mubr.f32.gmra.mrb[0].mxu0 %v257
        %v355 = vpop.f32.mrb[0].mxu0
        %v356 = vadd.f32 0.0, %v355
        %v357 = vpop.f32.mrb[0].mxu0
        %358 = vmatprep.mubr.f32.mxu0 0.0
        %359 = vmatmul.mubr.f32.gmra.mrb[0].mxu0 %v258
        %v360 = vpop.f32.mrb[0].mxu0
        %v361 = vadd.f32 0.0, %v360
        %v362 = vpop.f32.mrb[0].mxu0
        %363 = vmatprep.mubr.f32.mxu0 0.0
        %364 = vmatmul.mubr.f32.gmra.mrb[0].mxu0 %v259
        %v365 = vpop.f32.mrb[0].mxu0
        %v366 = vadd.f32 0.0, %v365
        %v367 = vpop.f32.mrb[0].mxu0
        %368 = vmatprep.mubr.f32.mxu0 0.0
        %369 = vmatmul.mubr.f32.gmra.mrb[0].mxu0 %v260
        %v370 = vpop.f32.mrb[0].mxu0
        %v371 = vadd.f32 0.0, %v370
        %v372 = vpop.f32.mrb[0].mxu0
        %373 = vmatprep.mubr.f32.mxu0 0.0
        %374 = vmatmul.mubr.f32.gmra.mrb[0].mxu0 %v261
        %v375 = vpop.f32.mrb[0].mxu0
        %v376 = vadd.f32 0.0, %v375
        %v377 = vpop.f32.mrb[0].mxu0
        %378 = vmatprep.mubr.f32.mxu0 0.0
        %379 = vmatmul.mubr.f32.gmra.mrb[0].mxu0 %v262
        %v380 = vpop.f32.mrb[0].mxu0
        %v381 = vadd.f32 0.0, %v380
        %v382 = vpop.f32.mrb[0].mxu0
        %383 = vmatprep.mubr.f32.mxu0 0.0
        %384 = vmatmul.mubr.f32.gmra.mrb[0].mxu0 %v263
        %v385 = vpop.f32.mrb[0].mxu0
        %v386 = vadd.f32 0.0, %v385
        %v387 = vpop.f32.mrb[0].mxu0
        %388 = vmatprep.mubr.f32.mxu0 0.0
        %389 = vmatmul.mubr.f32.gmra.mrb[0].mxu0 %v264
        %v390 = vpop.f32.mrb[0].mxu0
        %v391 = vadd.f32 0.0, %v390
        %v392 = vpop.f32.mrb[0].mxu0
        %393 = vmatprep.mubr.f32.mxu0 0.0
        %394 = vmatmul.mubr.f32.gmra.mrb[0].mxu0 %v265
        %v395 = vpop.f32.mrb[0].mxu0
        %v396 = vadd.f32 0.0, %v395
        %v397 = vpop.f32.mrb[0].mxu0
        %398 = vmatprep.mubr.f32.mxu0 0.0
        %399 = vmatmul.mubr.f32.gmra.mrb[0].mxu0 %v266
        %v400 = vpop.f32.mrb[0].mxu0
        %v401 = vadd.f32 0.0, %v400
        %v402 = vpop.f32.mrb[0].mxu0
        %403 = vmatprep.mubr.f32.mxu0 0.0
        %404 = vmatmul.mubr.f32.gmra.mrb[0].mxu0 %v267
        %v405 = vpop.f32.mrb[0].mxu0
        %v406 = vadd.f32 0.0, %v405
        %v407 = vpop.f32.mrb[0].mxu0
        %408 = vmatprep.mubr.f32.mxu0 0.0
        %409 = vmatmul.mubr.f32.gmra.mrb[0].mxu0 %v268
        %v410 = vpop.f32.mrb[0].mxu0
        %v411 = vadd.f32 0.0, %v410
        %v412 = vpop.f32.mrb[0].mxu0
        %413 = vmatprep.mubr.f32.mxu0 0.0
        %414 = vmatmul.mubr.f32.gmra.mrb[0].mxu0 %v269
        %v415 = vpop.f32.mrb[0].mxu0
        %v416 = vadd.f32 0.0, %v415
        %v417 = vpop.f32.mrb[0].mxu0
        %418 = vmatprep.mubr.f32.mxu0 0.0
        %419 = vmatmul.mubr.f32.gmra.mrb[0].mxu0 %v270
        %v420 = vpop.f32.mrb[0].mxu0
        %v421 = vadd.f32 0.0, %v420
        %v422 = vpop.f32.mrb[0].mxu0
        %423 = vmatprep.mubr.f32.mxu0 0.0
        %424 = vmatmul.mubr.f32.gmra.mrb[0].mxu0 %v271
        %v425 = vpop.f32.mrb[0].mxu0
        %v426 = vadd.f32 0.0, %v425
        %v427 = vpop.f32.mrb[0].mxu0
        %428 = vmatprep.mubr.f32.mxu0 0.0
        %429 = vmatmul.mubr.f32.gmra.mrb[0].mxu0 %v272
        %v430 = vpop.f32.mrb[0].mxu0
        %v431 = vadd.f32 0.0, %v430
        %v432 = vpop.f32.mrb[0].mxu0
        %433 = vdwg.mxu0
        %v434 = vadd.f32 %v241, %v356
        %v435 = vadd.f32 %v242, %v361
        %v436 = vadd.f32 %v243, %v366
        %v437 = vadd.f32 %v244, %v371
        %v438 = vadd.f32 %v245, %v376
        %v439 = vadd.f32 %v246, %v381
        %v440 = vadd.f32 %v247, %v386
        %v441 = vadd.f32 %v248, %v391
        %v442 = vadd.f32 %v249, %v396
        %v443 = vadd.f32 %v250, %v401
        %v444 = vadd.f32 %v251, %v406
        %v445 = vadd.f32 %v252, %v411
        %v446 = vadd.f32 %v253, %v416
        %v447 = vadd.f32 %v254, %v421
        %v448 = vadd.f32 %v255, %v426
        %v449 = vadd.f32 %v256, %v431
        %450 = vst [vmem:[#allocation2] sm:$0xff] %v434
        %451 = vst [vmem:[#allocation2 + $0x8] sm:$0xff] %v435
        %452 = vst [vmem:[#allocation2 + $0x10] sm:$0xff] %v436
        %453 = vst [vmem:[#allocation2 + $0x18] sm:$0xff] %v437
        %454 = vst [vmem:[#allocation2 + $0x20] sm:$0xff] %v438
        %455 = vst [vmem:[#allocation2 + $0x28] sm:$0xff] %v439
        %456 = vst [vmem:[#allocation2 + $0x30] sm:$0xff] %v440
        %457 = vst [vmem:[#allocation2 + $0x38] sm:$0xff] %v441
        %458 = vst [vmem:[#allocation2 + $0x40] sm:$0xff] %v442
        %459 = vst [vmem:[#allocation2 + $0x48] sm:$0xff] %v443
        %460 = vst [vmem:[#allocation2 + $0x50] sm:$0xff] %v444
        %461 = vst [vmem:[#allocation2 + $0x58] sm:$0xff] %v445
        %462 = vst [vmem:[#allocation2 + $0x60] sm:$0xff] %v446
        %463 = vst [vmem:[#allocation2 + $0x68] sm:$0xff] %v447
        %464 = vst [vmem:[#allocation2 + $0x70] sm:$0xff] %v448
        %465 = vst [vmem:[#allocation2 + $0x78] sm:$0xff] %v449
        %p466 = scmp.eq.s32.totalorder %s27, 1
        // Predicated region
        $region41: #{hgnn_conv.3} parent=27 // pred_check
          %p467 = pneg %p466
        $region42: #{hgnn_conv.3} parent=27 // pred_check_branch
          %469 = sbr.rel (%p467) target = $region44
        $region43: #{hgnn_conv.3} parent=27 // pred_region
          %v470 = vld [vmem:[#allocation2] sm:$0xff]
          %v471 = vld [vmem:[#allocation2 + $0x8] sm:$0xff]
          %v472 = vld [vmem:[#allocation2 + $0x10] sm:$0xff]
          %v473 = vld [vmem:[#allocation2 + $0x18] sm:$0xff]
          %v474 = vld [vmem:[#allocation2 + $0x20] sm:$0xff]
          %v475 = vld [vmem:[#allocation2 + $0x28] sm:$0xff]
          %v476 = vld [vmem:[#allocation2 + $0x30] sm:$0xff]
          %v477 = vld [vmem:[#allocation2 + $0x38] sm:$0xff]
          %v478 = vld [vmem:[#allocation2 + $0x40] sm:$0xff]
          %v479 = vld [vmem:[#allocation2 + $0x48] sm:$0xff]
          %v480 = vld [vmem:[#allocation2 + $0x50] sm:$0xff]
          %v481 = vld [vmem:[#allocation2 + $0x58] sm:$0xff]
          %v482 = vld [vmem:[#allocation2 + $0x60] sm:$0xff]
          %v483 = vld [vmem:[#allocation2 + $0x68] sm:$0xff]
          %v484 = vld [vmem:[#allocation2 + $0x70] sm:$0xff]
          %v485 = vld [vmem:[#allocation2 + $0x78] sm:$0xff]
          %486 = vst [vmem:[%s217] sm:$0xff] %v470
          %487 = vst [vmem:[%s217 + $0x8] sm:$0xff] %v471
          %488 = vst [vmem:[%s217 + $0x10] sm:$0xff] %v472
          %489 = vst [vmem:[%s217 + $0x18] sm:$0xff] %v473
          %490 = vst [vmem:[%s217 + $0x20] sm:$0xff] %v474
          %491 = vst [vmem:[%s217 + $0x28] sm:$0xff] %v475
          %492 = vst [vmem:[%s217 + $0x30] sm:$0xff] %v476
          %493 = vst [vmem:[%s217 + $0x38] sm:$0xff] %v477
          %494 = vst [vmem:[%s217 + $0x40] sm:$0xff] %v478
          %495 = vst [vmem:[%s217 + $0x48] sm:$0xff] %v479
          %496 = vst [vmem:[%s217 + $0x50] sm:$0xff] %v480
          %497 = vst [vmem:[%s217 + $0x58] sm:$0xff] %v481
          %498 = vst [vmem:[%s217 + $0x60] sm:$0xff] %v482
          %499 = vst [vmem:[%s217 + $0x68] sm:$0xff] %v483
          %500 = vst [vmem:[%s217 + $0x70] sm:$0xff] %v484
          %501 = vst [vmem:[%s217 + $0x78] sm:$0xff] %v485
        $region44: #{hgnn_conv.3} parent=27 // pred_fallthru
          _
        %s502 = sand.u32 %s96, 1
        %s503 = scalar_lea.sflag [#allocation5], %s502
        %s504 = sand.u32 %s96, 1
        %s505 = smul.addr %s504, 128
        %s506 = scalar_lea.vmem [#allocation8], %s505
        // Predicated region
        $region45: #{hgnn_conv.3} parent=27 // pred_check
          %p507 = pneg %p106
        $region46: #{hgnn_conv.3} parent=27 // pred_check_branch
          %509 = sbr.rel (%p507) target = $region48
        $region47: #{hgnn_conv.3} parent=27 // pred_region
          %s510 = smul.u32 16, %s26
          %s512 = ssub.s32 2048, 2048
          %513 = vsyncadd %s503, %s512
          %s514 = smul.addr %s510, 128
          %s515 = scalar_lea.hbm %s2, %s514
          %s516 = sshll.u32 %s506, 4
          %s517 = int_to_ptr.vmem [resolvable:$true] %s516
          %522 = dma.vmem_to_hbm [thread:$0]  %s517, 2048, %s515, %s503, 128, 128, 8
        $region48: #{hgnn_conv.3} parent=27 // pred_fallthru
          _
      $region28: #{hgnn_conv.3} parent=5 // pred_fallthru
        _
      %p523 = scmp.le.s32.totalorder 2, %s17
      // Predicated region
      $region49: #{hgnn_conv.3} parent=5 // pred_check
        %p524 = pneg %p523
      $region50: #{hgnn_conv.3} parent=5 // pred_check_branch
        %526 = sbr.rel (%p524) target = $region52
      $region51: #{hgnn_conv.3} parent=5 // pred_region
        %s527 = ssub.s32 %s17, 2
        // Predicated region
        $region53: #{hgnn_conv.3} parent=51 // pred_check
          %p528 = pneg %p112
        $region54: #{hgnn_conv.3} parent=51 // pred_check_branch
          %530 = sbr.rel (%p528) target = $region56
        $region55: #{hgnn_conv.3} parent=51 // pred_region
          %s531 = sand.u32 %s97, 1
          %s532 = scalar_lea.sflag [#allocation5], %s531
          %s533 = sand.u32 %s97, 1
          %s534 = smul.addr %s533, 128
          %s535 = scalar_lea.vmem [#allocation8], %s534
          %536 = dma.done %s532, 2048
        $region56: #{hgnn_conv.3} parent=51 // pred_fallthru
          _
      $region52: #{hgnn_conv.3} parent=5 // pred_fallthru
        _
    $region6: #{hgnn_conv.3} parent=1 // loop_footer
      %s21 = sadd.s32 1, %s17
    $region7: #{hgnn_conv.3} parent=1 // loop_footer_branch
      %16 = sbr.rel target = $region3
    $region8: #{hgnn_conv.3} parent=1 // loop_exit
      _
    %537 = vsyncpa [#allocation4], 1
    %s538 = scalar_lea.sflag [#allocation4], 1
    %539 = vsyncpa %s538, 1
    %540 = vsyncpa [#allocation7], 1
    %s541 = scalar_lea.sflag [#allocation7], 1
    %542 = vsyncpa %s541, 1
    %543 = vsyncpa [#allocation5], 1
    %s544 = scalar_lea.sflag [#allocation5], 1
    %545 = vsyncpa %s544, 1

</llo_original>
